<compile_context>
chip_gen: v7x
topology: tpu7x:2x2x1
jax: 0.10.0
libtpu: 0.0.40
codegen_flags: <defaults>
</compile_context>

<pallas_src>
import functools

import jax
import jax.numpy as jnp
from jax.experimental import pallas as pl
from jax.experimental.pallas import tpu as pltpu

_LANE = 128
_SUBLANE = 8


def _pick_tile(dim, target, align):
    """Largest multiple of `align` that divides `dim` and is <= target.

    Falls back to the full dimension (always a legal block extent) if `dim`
    is not a multiple of `align`.
    """
    if dim % align != 0:
        return dim
    t = min(dim, max(target // align, 1) * align)
    while t >= align:
        if dim % t == 0:
            return t
        t -= align
    return dim


def _linear_relu_kernel(x_ref, w_ref, b_ref, o_ref, acc_ref):
    k = pl.program_id(1)

    @pl.when(k == 0)
    def _():
        acc_ref[...] = jnp.zeros_like(acc_ref)

    # Single MXU matmul-accumulate per K step (bf16 inputs, f32 accumulation).
    acc_ref[...] += jnp.dot(
        x_ref[...], w_ref[...], preferred_element_type=jnp.float32
    )

    @pl.when(k == pl.num_programs(1) - 1)
    def _():
        # Bias + ReLU epilogue, applied exactly once on the last K step.
        o_ref[...] = jnp.maximum(acc_ref[...] + b_ref[...], 0.0).astype(o_ref.dtype)


def _fused_linear_relu(x, w, b, *, tk_target=2048, tn_target=1024):
    """ReLU(x @ w + b).  x:(N,K) bf16, w:(K,M) bf16, b:(1,M) f32 -> (N,M) f32."""
    n, kdim = x.shape
    m = w.shape[1]
    tk = _pick_tile(kdim, tk_target, _LANE)
    tn = _pick_tile(m, tn_target, _LANE)
    grid = (m // tn, kdim // tk)  # reduction axis last

    flops = 2 * n * kdim * m
    bytes_accessed = int(
        w.size * w.dtype.itemsize
        + x.size * x.dtype.itemsize
        + b.size * b.dtype.itemsize
        + n * m * 4
    )

    return pl.pallas_call(
        _linear_relu_kernel,
        out_shape=jax.ShapeDtypeStruct((n, m), jnp.float32),
        grid_spec=pltpu.PrefetchScalarGridSpec(
            num_scalar_prefetch=0,
            grid=grid,
            in_specs=[
                pl.BlockSpec((n, tk), lambda j, k: (0, k)),   # activations (resident-ish, tiny)
                pl.BlockSpec((tk, tn), lambda j, k: (k, j)),  # streamed weight tiles
                pl.BlockSpec((1, tn), lambda j, k: (0, j)),   # bias
            ],
            out_specs=pl.BlockSpec((n, tn), lambda j, k: (0, j)),
            scratch_shapes=[pltpu.VMEM((n, tn), jnp.float32)],  # f32 accumulator
        ),
        compiler_params=pltpu.CompilerParams(
            dimension_semantics=("parallel", "arbitrary"),
            vmem_limit_bytes=48 * 1024 * 1024,  # fits every generation (v7x = 64 MiB phys)
        ),
        cost_estimate=pl.CostEstimate(
            flops=flops, transcendentals=0, bytes_accessed=bytes_accessed
        ),
    )(x, w, b)


def boxhead_forward(x_nchw, w1, b1, w2, b2, *, tk_target=2048, tn_target=1024):
    """x_nchw: (N, C, H, W) f32.  w1:(F,H1), w2:(H1,H2) in (in,out) layout.

    Returns (N, H2) f32, equal to ReLU(ReLU(flatten(x) @ w1 + b1) @ w2 + b2).
    """
    n = x_nchw.shape[0]
    # Flatten exactly like torch.flatten(start_dim=1) (row-major over C,H,W).
    x2d = x_nchw.reshape(n, -1)

    # Pad the batch to a sublane multiple; padded rows are sliced off at the end.
    n_pad = max(_SUBLANE, ((n + _SUBLANE - 1) // _SUBLANE) * _SUBLANE)
    if n_pad != n:
        x2d = jnp.pad(x2d, ((0, n_pad - n), (0, 0)))

    # bf16 weights/activations halve HBM traffic; accumulation stays f32 in-kernel.
    xb = x2d.astype(jnp.bfloat16)
    w1b = w1.astype(jnp.bfloat16)
    w2b = w2.astype(jnp.bfloat16)
    b1f = b1.reshape(1, -1).astype(jnp.float32)
    b2f = b2.reshape(1, -1).astype(jnp.float32)

    h = _fused_linear_relu(xb, w1b, b1f, tk_target=tk_target, tn_target=tn_target)
    # TODO(synk): Dropout is identity in eval mode (omitted).
    y = _fused_linear_relu(
        h.astype(jnp.bfloat16), w2b, b2f, tk_target=tk_target, tn_target=tn_target
    )
    return y[:n]


if __name__ == "__main__":
    # Small shapes consistent with the module's forward (scaled down from
    # VGG16's 25088 -> 4096 -> 4096 head).
    N, C, H, W = 2, 8, 8, 8          # flattened feature dim F = 512
    F = C * H * W
    H1, H2 = 256, 256                # the two retained Linear layers

    key = jax.random.PRNGKey(0)
    kx, kw1, kb1, kw2, kb2 = jax.random.split(key, 5)

    x = jax.random.normal(kx, (N, C, H, W), dtype=jnp.float32)
    # Weights already in (in, out) layout (transposed from PyTorch's (out, in)).
    w1 = jax.random.normal(kw1, (F, H1), dtype=jnp.float32) * 0.02
    b1 = jax.random.normal(kb1, (1, H1), dtype=jnp.float32) * 0.01
    w2 = jax.random.normal(kw2, (H1, H2), dtype=jnp.float32) * 0.02
    b2 = jax.random.normal(kb2, (1, H2), dtype=jnp.float32) * 0.01

    # Small tile targets so the toy shapes exercise a real (parallel, arbitrary)
    # grid with K accumulation; at VGG scale the defaults (2048/1024) apply.
    fwd = jax.jit(functools.partial(boxhead_forward, tk_target=128, tn_target=128))
    out = jax.block_until_ready(fwd(x, w1, b1, w2, b2))

    # Pure-JAX reference with the same bf16 casts / f32 accumulation.
    x2d = x.reshape(N, -1)
    h_ref = jnp.maximum(
        jnp.dot(x2d.astype(jnp.bfloat16), w1.astype(jnp.bfloat16),
                preferred_element_type=jnp.float32) + b1, 0.0)
    ref = jnp.maximum(
        jnp.dot(h_ref.astype(jnp.bfloat16), w2.astype(jnp.bfloat16),
                preferred_element_type=jnp.float32) + b2, 0.0)

    assert out.shape == (N, H2)
    assert jnp.allclose(out, ref, atol=5e-3, rtol=5e-3)

    print("KERNEL_OK")
</pallas_src>

<mosaic_0001>
module attributes {stable_mosaic.version = 11 : i64} {
  func.func @_linear_relu_kernel(%arg0: i32, %arg1: i32, %arg2: memref<8x128xbf16, #tpu.memory_space<vmem>>, %arg3: memref<128x128xbf16, #tpu.memory_space<vmem>>, %arg4: memref<1x128xf32, #tpu.memory_space<vmem>>, %arg5: memref<8x128xf32, #tpu.memory_space<vmem>>, %arg6: memref<8x128xf32, #tpu.memory_space<vmem>>) attributes {dimension_semantics = [#tpu.dimension_semantics<parallel>, #tpu.dimension_semantics<arbitrary>], iteration_bounds = array<i64: 2, 2>, scalar_prefetch = 0 : i64, scratch_operands = 1 : i64, tpu.core_type = #tpu.core_type<tc>, window_params = [{transform_indices = @transform_0, window_bounds = array<i64: 8, 128>}, {transform_indices = @transform_1, window_bounds = array<i64: 128, 128>}, {transform_indices = @transform_2, window_bounds = array<i64: 1, 128>}, {transform_indices = @transform_3, window_bounds = array<i64: 8, 128>}]} {
    %c0_i32 = arith.constant 0 : i32
    %0 = arith.cmpi eq, %arg1, %c0_i32 : i32
    %1 = arith.extui %0 : i1 to i32
    %c0_i32_0 = arith.constant 0 : i32
    %2 = arith.cmpi ne, %1, %c0_i32_0 : i32
    scf.if %2 {
      %cst_9 = arith.constant 0.000000e+00 : f32
      %12 = vector.broadcast %cst_9 : f32 to vector<8x128xf32>
      %c0_10 = arith.constant 0 : index
      %c0_11 = arith.constant 0 : index
      %13 = vector.load %arg6[%c0_10, %c0_11] : memref<8x128xf32, #tpu.memory_space<vmem>>, vector<8x128xf32>
      tpu.vector_store %arg6[%c0_10, %c0_11], %12 {strides = array<i32>} : memref<8x128xf32, #tpu.memory_space<vmem>>, vector<8x128xf32>,
    } else {
    }
    %c0 = arith.constant 0 : index
    %c0_1 = arith.constant 0 : index
    %3 = vector.load %arg6[%c0, %c0_1] : memref<8x128xf32, #tpu.memory_space<vmem>>, vector<8x128xf32>
    %c0_2 = arith.constant 0 : index
    %c0_3 = arith.constant 0 : index
    %4 = vector.load %arg2[%c0_2, %c0_3] : memref<8x128xbf16, #tpu.memory_space<vmem>>, vector<8x128xbf16>
    %c0_4 = arith.constant 0 : index
    %c0_5 = arith.constant 0 : index
    %5 = vector.load %arg3[%c0_4, %c0_5] : memref<128x128xbf16, #tpu.memory_space<vmem>>, vector<128x128xbf16>
    %cst = arith.constant dense<0.000000e+00> : vector<8x128xf32>
    %6 = tpu.matmul %4, %5, %cst {dimension_numbers = #tpu.dot_dimension_numbers<[1], [0], [0], [1], [0, 0, 1, 1], [], []>} : vector<8x128xbf16>, vector<128x128xbf16>, vector<8x128xf32> -> vector<8x128xf32>
    %7 = arith.addf %3, %6 : vector<8x128xf32>
    %c0_6 = arith.constant 0 : index
    %c0_7 = arith.constant 0 : index
    %8 = vector.load %arg6[%c0_6, %c0_7] : memref<8x128xf32, #tpu.memory_space<vmem>>, vector<8x128xf32>
    tpu.vector_store %arg6[%c0_6, %c0_7], %7 {strides = array<i32>} : memref<8x128xf32, #tpu.memory_space<vmem>>, vector<8x128xf32>,
    %c1_i32 = arith.constant 1 : i32
    %9 = arith.cmpi eq, %arg1, %c1_i32 : i32
    %10 = arith.extui %9 : i1 to i32
    %c0_i32_8 = arith.constant 0 : i32
    %11 = arith.cmpi ne, %10, %c0_i32_8 : i32
    scf.if %11 {
      %c0_9 = arith.constant 0 : index
      %c0_10 = arith.constant 0 : index
      %12 = vector.load %arg6[%c0_9, %c0_10] : memref<8x128xf32, #tpu.memory_space<vmem>>, vector<8x128xf32>
      %c0_11 = arith.constant 0 : index
      %c0_12 = arith.constant 0 : index
      %13 = vector.load %arg4[%c0_11, %c0_12] : memref<1x128xf32, #tpu.memory_space<vmem>>, vector<1x128xf32>
      %14 = vector.broadcast %13 : vector<1x128xf32> to vector<8x128xf32>
      %15 = arith.addf %12, %14 : vector<8x128xf32>
      %cst_13 = arith.constant 0.000000e+00 : f32
      %16 = vector.broadcast %cst_13 : f32 to vector<8x128xf32>
      %17 = arith.maximumf %15, %16 : vector<8x128xf32>
      %c0_14 = arith.constant 0 : index
      %c0_15 = arith.constant 0 : index
      %18 = vector.load %arg5[%c0_14, %c0_15] : memref<8x128xf32, #tpu.memory_space<vmem>>, vector<8x128xf32>
      tpu.vector_store %arg5[%c0_14, %c0_15], %17 {strides = array<i32>} : memref<8x128xf32, #tpu.memory_space<vmem>>, vector<8x128xf32>,
    } else {
    }
    return
  }
  func.func @transform_0(%arg0: i32, %arg1: i32) -> (i32, i32) {
    %c0_i32 = arith.constant 0 : i32
    %c0_i32_0 = arith.constant 0 : i32
    return %c0_i32, %arg1 : i32, i32
  }
  func.func @transform_1(%arg0: i32, %arg1: i32) -> (i32, i32) {
    %c0_i32 = arith.constant 0 : i32
    return %arg1, %arg0 : i32, i32
  }
  func.func @transform_2(%arg0: i32, %arg1: i32) -> (i32, i32) {
    %c0_i32 = arith.constant 0 : i32
    %c0_i32_0 = arith.constant 0 : i32
    return %c0_i32, %arg0 : i32, i32
  }
  func.func @transform_3(%arg0: i32, %arg1: i32) -> (i32, i32) {
    %c0_i32 = arith.constant 0 : i32
    %c0_i32_0 = arith.constant 0 : i32
    return %c0_i32, %arg0 : i32, i32
  }
}

module attributes {stable_mosaic.version = 11 : i64} {
  func.func @_linear_relu_kernel(%arg0: i32, %arg1: i32, %arg2: memref<8x128xbf16, #tpu.memory_space<vmem>>, %arg3: memref<128x128xbf16, #tpu.memory_space<vmem>>, %arg4: memref<1x128xf32, #tpu.memory_space<vmem>>, %arg5: memref<8x128xf32, #tpu.memory_space<vmem>>, %arg6: memref<8x128xf32, #tpu.memory_space<vmem>>) attributes {dimension_semantics = [#tpu.dimension_semantics<parallel>, #tpu.dimension_semantics<arbitrary>], iteration_bounds = array<i64: 2, 4>, scalar_prefetch = 0 : i64, scratch_operands = 1 : i64, tpu.core_type = #tpu.core_type<tc>, window_params = [{transform_indices = @transform_0, window_bounds = array<i64: 8, 128>}, {transform_indices = @transform_1, window_bounds = array<i64: 128, 128>}, {transform_indices = @transform_2, window_bounds = array<i64: 1, 128>}, {transform_indices = @transform_3, window_bounds = array<i64: 8, 128>}]} {
    %c0_i32 = arith.constant 0 : i32
    %0 = arith.cmpi eq, %arg1, %c0_i32 : i32
    %1 = arith.extui %0 : i1 to i32
    %c0_i32_0 = arith.constant 0 : i32
    %2 = arith.cmpi ne, %1, %c0_i32_0 : i32
    scf.if %2 {
      %cst_9 = arith.constant 0.000000e+00 : f32
      %12 = vector.broadcast %cst_9 : f32 to vector<8x128xf32>
      %c0_10 = arith.constant 0 : index
      %c0_11 = arith.constant 0 : index
      %13 = vector.load %arg6[%c0_10, %c0_11] : memref<8x128xf32, #tpu.memory_space<vmem>>, vector<8x128xf32>
      tpu.vector_store %arg6[%c0_10, %c0_11], %12 {strides = array<i32>} : memref<8x128xf32, #tpu.memory_space<vmem>>, vector<8x128xf32>,
    } else {
    }
    %c0 = arith.constant 0 : index
    %c0_1 = arith.constant 0 : index
    %3 = vector.load %arg6[%c0, %c0_1] : memref<8x128xf32, #tpu.memory_space<vmem>>, vector<8x128xf32>
    %c0_2 = arith.constant 0 : index
    %c0_3 = arith.constant 0 : index
    %4 = vector.load %arg2[%c0_2, %c0_3] : memref<8x128xbf16, #tpu.memory_space<vmem>>, vector<8x128xbf16>
    %c0_4 = arith.constant 0 : index
    %c0_5 = arith.constant 0 : index
    %5 = vector.load %arg3[%c0_4, %c0_5] : memref<128x128xbf16, #tpu.memory_space<vmem>>, vector<128x128xbf16>
    %cst = arith.constant dense<0.000000e+00> : vector<8x128xf32>
    %6 = tpu.matmul %4, %5, %cst {dimension_numbers = #tpu.dot_dimension_numbers<[1], [0], [0], [1], [0, 0, 1, 1], [], []>} : vector<8x128xbf16>, vector<128x128xbf16>, vector<8x128xf32> -> vector<8x128xf32>
    %7 = arith.addf %3, %6 : vector<8x128xf32>
    %c0_6 = arith.constant 0 : index
    %c0_7 = arith.constant 0 : index
    %8 = vector.load %arg6[%c0_6, %c0_7] : memref<8x128xf32, #tpu.memory_space<vmem>>, vector<8x128xf32>
    tpu.vector_store %arg6[%c0_6, %c0_7], %7 {strides = array<i32>} : memref<8x128xf32, #tpu.memory_space<vmem>>, vector<8x128xf32>,
    %c3_i32 = arith.constant 3 : i32
    %9 = arith.cmpi eq, %arg1, %c3_i32 : i32
    %10 = arith.extui %9 : i1 to i32
    %c0_i32_8 = arith.constant 0 : i32
    %11 = arith.cmpi ne, %10, %c0_i32_8 : i32
    scf.if %11 {
      %c0_9 = arith.constant 0 : index
      %c0_10 = arith.constant 0 : index
      %12 = vector.load %arg6[%c0_9, %c0_10] : memref<8x128xf32, #tpu.memory_space<vmem>>, vector<8x128xf32>
      %c0_11 = arith.constant 0 : index
      %c0_12 = arith.constant 0 : index
      %13 = vector.load %arg4[%c0_11, %c0_12] : memref<1x128xf32, #tpu.memory_space<vmem>>, vector<1x128xf32>
      %14 = vector.broadcast %13 : vector<1x128xf32> to vector<8x128xf32>
      %15 = arith.addf %12, %14 : vector<8x128xf32>
      %cst_13 = arith.constant 0.000000e+00 : f32
      %16 = vector.broadcast %cst_13 : f32 to vector<8x128xf32>
      %17 = arith.maximumf %15, %16 : vector<8x128xf32>
      %c0_14 = arith.constant 0 : index
      %c0_15 = arith.constant 0 : index
      %18 = vector.load %arg5[%c0_14, %c0_15] : memref<8x128xf32, #tpu.memory_space<vmem>>, vector<8x128xf32>
      tpu.vector_store %arg5[%c0_14, %c0_15], %17 {strides = array<i32>} : memref<8x128xf32, #tpu.memory_space<vmem>>, vector<8x128xf32>,
    } else {
    }
    return
  }
  func.func @transform_0(%arg0: i32, %arg1: i32) -> (i32, i32) {
    %c0_i32 = arith.constant 0 : i32
    %c0_i32_0 = arith.constant 0 : i32
    return %c0_i32, %arg1 : i32, i32
  }
  func.func @transform_1(%arg0: i32, %arg1: i32) -> (i32, i32) {
    %c0_i32 = arith.constant 0 : i32
    return %arg1, %arg0 : i32, i32
  }
  func.func @transform_2(%arg0: i32, %arg1: i32) -> (i32, i32) {
    %c0_i32 = arith.constant 0 : i32
    %c0_i32_0 = arith.constant 0 : i32
    return %c0_i32, %arg0 : i32, i32
  }
  func.func @transform_3(%arg0: i32, %arg1: i32) -> (i32, i32) {
    %c0_i32 = arith.constant 0 : i32
    %c0_i32_0 = arith.constant 0 : i32
    return %c0_i32, %arg0 : i32, i32
  }
}

</mosaic_0001>

<llo_original>
// kernel: boxhead_forward.3
$region0: #{boxhead_forward.3}
  #allocation0 [shape = 'u32[]', space=smem, size = 0x4, offset = 0x4, fixed_abs, tag = 'smem constant byte address 0x4 - core index']
  #allocation1 [shape = 'u32[144,128]{1,0:T(1,128)}', space=vmem, size = 0x12000, scoped, tag = 'internal scratch']
  #allocation2 [shape = 'f32[8,128]{1,0:T(8,128)}', space=vmem, size = 0x1000, scoped, tag = 'scratch operand']
  %s0 = inlined_call_operand.vmem [shape: bf16[8,256], index: 0, kind: input, shape index: {}]
  %s1 = inlined_call_operand.vmem [shape: bf16[256,256], index: 1, kind: input, shape index: {}]
  %s2 = inlined_call_operand.vmem [shape: f32[1,256], index: 2, kind: input, shape index: {}]
  %s3 = inlined_call_operand.vmem [shape: f32[8,256], index: 3, kind: output, shape index: {}]
  %s4 = sld [smem:[#allocation0]]
  $region94: #{boxhead_forward.3} parent=0
    _
  %s6 = ssub.s32 1, %s4
  %s7 = scalar_select 0, %s6, %s4
  $region1: #{boxhead_forward.3} parent=0
    #allocation3 [shape = 'u8[65536]{0}', space=vmem, size = 0x10000, scoped, tag = 'input window, operand 1']
    loop: start=0, step=1, limit=6
    $region2: #{boxhead_forward.3} parent=1 // loop_pre_header
      _
    $region3: #{boxhead_forward.3} parent=1 // loop_header
      %s9 = sphi 0, %s13
      %p10 = scmp.ge.s32.totalorder %s9, 6
      %s16 = sphi 0, %s28
      %s17 = sphi 0, %s24
      %s18 = sphi 0, %s16
      %s19 = sphi 0, %s17
      %s20 = sphi 0, %s18
      %s21 = sphi 0, %s19
      %s31 = sphi 0, %s33
      %s34 = sphi 0, %s31
      %s35 = sphi 0, %s34
      %s51 = sphi 0, %s35
      %s59 = sphi 0, %s61
      %s62 = sphi 0, %s59
      %s63 = sphi 0, %s62
      %s79 = sphi 0, %s63
      %s85 = sphi 0, %s87
      %s88 = sphi 0, %s85
      %s89 = sphi 0, %s88
      %s105 = sphi 0, %s89
      %s111 = sphi 0, %s113
      %s114 = sphi 0, %s111
      %s115 = sphi 0, %s114
      %s131 = sphi 0, %s115
    $region4: #{boxhead_forward.3} parent=1 // loop_header_branch
      %12 = sbr.rel (%p10) target = $region8
    $region5: #{boxhead_forward.3} parent=1 // loop_body
      %s14 = ssub.s32 %s9, 1
      %s15 = ssub.s32 %s9, 2
      %s22 = sadd.s32 1, %s17
      %p23 = scmp.ge.s32.totalorder %s22, 2
      %s24 = scalar_select %p23, 0, %s22
      %s25 = sadd.s32 1, %s16
      %s26 = scalar_select %p23, %s25, %s16
      %p27 = scmp.ge.s32.totalorder %s26, 2
      %s28 = scalar_select %p27, 0, %s26
      %s29 = ssub.s32 %s17, %s24
      %p30 = scmp.eq.s32.totalorder %s29, 0
      %s32 = sadd.s32 %s31, 1
      %s33 = scalar_select %p30, %s31, %s32
      %p36 = pneg %p30
      %p37 = scmp.eq.s32.totalorder %s9, 3
      %p38 = por %p36, %p37
      %p39 = scmp.ne.s32.totalorder %s31, %s34
      %p40 = scmp.eq.s32.totalorder %s9, 0
      %p41 = por %p39, %p40
      %p42 = scmp.ne.s32.totalorder %s31, %s34
      %p43 = scmp.eq.s32.totalorder %s14, 3
      %p44 = por %p42, %p43
      %p45 = scmp.ne.s32.totalorder %s34, %s35
      %p46 = scmp.eq.s32.totalorder %s14, 0
      %p47 = por %p45, %p46
      %p48 = scmp.ne.s32.totalorder %s34, %s35
      %p49 = scmp.eq.s32.totalorder %s15, 3
      %p50 = por %p48, %p49
      %p52 = scmp.ne.s32.totalorder %s35, %s51
      %p53 = scmp.eq.s32.totalorder %s15, 0
      %p54 = por %p52, %p53
      %s55 = ssub.s32 %s17, %s24
      %s56 = ssub.s32 %s16, %s28
      %s57 = sor.u32 %s55, %s56
      %p58 = scmp.eq.s32.totalorder %s57, 0
      %s60 = sadd.s32 %s59, 1
      %s61 = scalar_select %p58, %s59, %s60
      %p64 = pneg %p58
      %p65 = scmp.eq.s32.totalorder %s9, 3
      %p66 = por %p64, %p65
      %p67 = scmp.ne.s32.totalorder %s59, %s62
      %p68 = scmp.eq.s32.totalorder %s9, 0
      %p69 = por %p67, %p68
      %p70 = scmp.ne.s32.totalorder %s59, %s62
      %p71 = scmp.eq.s32.totalorder %s14, 3
      %p72 = por %p70, %p71
      %p73 = scmp.ne.s32.totalorder %s62, %s63
      %p74 = scmp.eq.s32.totalorder %s14, 0
      %p75 = por %p73, %p74
      %p76 = scmp.ne.s32.totalorder %s62, %s63
      %p77 = scmp.eq.s32.totalorder %s15, 3
      %p78 = por %p76, %p77
      %p80 = scmp.ne.s32.totalorder %s63, %s79
      %p81 = scmp.eq.s32.totalorder %s15, 0
      %p82 = por %p80, %p81
      %s83 = ssub.s32 %s16, %s28
      %p84 = scmp.eq.s32.totalorder %s83, 0
      %s86 = sadd.s32 %s85, 1
      %s87 = scalar_select %p84, %s85, %s86
      %p90 = pneg %p84
      %p91 = scmp.eq.s32.totalorder %s9, 3
      %p92 = por %p90, %p91
      %p93 = scmp.ne.s32.totalorder %s85, %s88
      %p94 = scmp.eq.s32.totalorder %s9, 0
      %p95 = por %p93, %p94
      %p96 = scmp.ne.s32.totalorder %s85, %s88
      %p97 = scmp.eq.s32.totalorder %s14, 3
      %p98 = por %p96, %p97
      %p99 = scmp.ne.s32.totalorder %s88, %s89
      %p100 = scmp.eq.s32.totalorder %s14, 0
      %p101 = por %p99, %p100
      %p102 = scmp.ne.s32.totalorder %s88, %s89
      %p103 = scmp.eq.s32.totalorder %s15, 3
      %p104 = por %p102, %p103
      %p106 = scmp.ne.s32.totalorder %s89, %s105
      %p107 = scmp.eq.s32.totalorder %s15, 0
      %p108 = por %p106, %p107
      %s109 = ssub.s32 %s16, %s28
      %p110 = scmp.eq.s32.totalorder %s109, 0
      %s112 = sadd.s32 %s111, 1
      %s113 = scalar_select %p110, %s111, %s112
      %p116 = pneg %p110
      %p117 = scmp.eq.s32.totalorder %s9, 3
      %p118 = por %p116, %p117
      %p119 = scmp.ne.s32.totalorder %s111, %s114
      %p120 = scmp.eq.s32.totalorder %s9, 0
      %p121 = por %p119, %p120
      %p122 = scmp.ne.s32.totalorder %s111, %s114
      %p123 = scmp.eq.s32.totalorder %s14, 3
      %p124 = por %p122, %p123
      %p125 = scmp.ne.s32.totalorder %s114, %s115
      %p126 = scmp.eq.s32.totalorder %s14, 0
      %p127 = por %p125, %p126
      %p128 = scmp.ne.s32.totalorder %s114, %s115
      %p129 = scmp.eq.s32.totalorder %s15, 3
      %p130 = por %p128, %p129
      %p132 = scmp.ne.s32.totalorder %s115, %s131
      %p133 = scmp.eq.s32.totalorder %s15, 0
      %p134 = por %p132, %p133
      %p135 = scmp.le.s32.totalorder 1, %s9
      %p136 = scmp.lt.s32.totalorder %s9, 5
      %p137 = pnand %p135, %p136
      %p138 = pneg %p137
      // Predicated region
      $region9: #{boxhead_forward.3} parent=5 // pred_check
        _
      $region10: #{boxhead_forward.3} parent=5 // pred_check_branch
        %140 = sbr.rel (%p137) target = $region12
      $region11: #{boxhead_forward.3} parent=5 // pred_region
        %s141 = ssub.s32 %s9, 1
      $region12: #{boxhead_forward.3} parent=5 // pred_fallthru
        _
      %p142 = scmp.lt.s32.totalorder %s9, 4
      // Predicated region
      $region13: #{boxhead_forward.3} parent=5 // pred_check
        %p143 = pneg %p142
      $region14: #{boxhead_forward.3} parent=5 // pred_check_branch
        %145 = sbr.rel (%p143) target = $region16
      $region15: #{boxhead_forward.3} parent=5 // pred_region
        // Predicated region
        $region17: #{boxhead_forward.3} parent=15 // pred_check
          %p146 = pneg %p41
        $region18: #{boxhead_forward.3} parent=15 // pred_check_branch
          %148 = sbr.rel (%p146) target = $region20
        $region19: #{boxhead_forward.3} parent=15 // pred_region
          %p149 = scmp.lt.s32.totalorder %s17, 1
          %s150 = scalar_select %p149, %s17, 1
          %s151 = smul.addr %s150, 4
          %s152 = scalar_lea.vmem %s0, %s151
        $region20: #{boxhead_forward.3} parent=15 // pred_fallthru
          _
        // Predicated region
        $region21: #{boxhead_forward.3} parent=15 // pred_check
          %p153 = pneg %p69
        $region22: #{boxhead_forward.3} parent=15 // pred_check_branch
          %155 = sbr.rel (%p153) target = $region24
        $region23: #{boxhead_forward.3} parent=15 // pred_region
          %s156 = sand.u32 %s59, 1
          %s157 = sand.u32 %s59, 1
          %s158 = smul.addr %s157, 64
          %s159 = scalar_lea.vmem [#allocation3], %s158
          %s160 = smul.u32 16, %s17
          %s161 = smul.addr %s160, 2
          %s162 = sadd.s32 %s16, %s161
          %s163 = smul.addr %s162, 4
          %s164 = scalar_lea.vmem %s1, %s163
          // Predicated region
          $region25: #{boxhead_forward.3} parent=23 // pred_check
            _
          $region26: #{boxhead_forward.3} parent=23 // pred_check_branch
            %166 = sbr.rel (0) target = $region28
          $region27: #{boxhead_forward.3} parent=23 // pred_region
            // Predicated region
            $region29: #{boxhead_forward.3} parent=27 // pred_check
              _
            $region30: #{boxhead_forward.3} parent=27 // pred_check_branch
              %168 = sbr.rel target = $region32
            $region31: #{boxhead_forward.3} parent=27 // pred_region
              // Predicated region
              $region44: #{boxhead_forward.3} parent=31 // pred_check
                _
              $region45: #{boxhead_forward.3} parent=31 // pred_check_branch
                %213 = sbr.rel (0) target = $region47
              $region46: #{boxhead_forward.3} parent=31 // pred_region
                loop: start=0, step=1, limit=1
                $region48: #{boxhead_forward.3} parent=46 // loop_pre_header
                  _
                $region49: #{boxhead_forward.3} parent=46 // loop_header
                  %s215 = sphi 0, %s219
                  %p216 = scmp.ge.s32.totalorder %s215, 1
                  %s220 = sphi %s164, %s164
                  %s221 = sphi %s159, %s159
                $region50: #{boxhead_forward.3} parent=46 // loop_header_branch
                  %218 = sbr.rel (%p216) target = $region54
                $region51: #{boxhead_forward.3} parent=46 // loop_body
                  _
                $region52: #{boxhead_forward.3} parent=46 // loop_footer
                  %s219 = sadd.s32 1, %s215
                $region53: #{boxhead_forward.3} parent=46 // loop_footer_branch
                  %214 = sbr.rel target = $region49
                $region54: #{boxhead_forward.3} parent=46 // loop_exit
                  _
                loop: start=0, step=1, limit=1
                $region55: #{boxhead_forward.3} parent=46 // loop_pre_header
                  _
                $region56: #{boxhead_forward.3} parent=46 // loop_header
                  %s224 = sphi 0, %s228
                  %p225 = scmp.ge.s32.totalorder %s224, 1
                  %s229 = sphi %s164, %s164
                  %s230 = sphi %s159, %s159
                $region57: #{boxhead_forward.3} parent=46 // loop_header_branch
                  %227 = sbr.rel (%p225) target = $region61
                $region58: #{boxhead_forward.3} parent=46 // loop_body
                  %v231 = vld [vmem:[%s229] sm:$0xf]
                  %232 = vst [vmem:[%s230] sm:$0xf] %v231
                  %v233 = vld [vmem:[%s229 + $0x8] sm:$0xf]
                  %234 = vst [vmem:[%s230 + $0x4] sm:$0xf] %v233
                  %v235 = vld [vmem:[%s229 + $0x10] sm:$0xf]
                  %236 = vst [vmem:[%s230 + $0x8] sm:$0xf] %v235
                  %v237 = vld [vmem:[%s229 + $0x18] sm:$0xf]
                  %238 = vst [vmem:[%s230 + $0xc] sm:$0xf] %v237
                  %v239 = vld [vmem:[%s229 + $0x20] sm:$0xf]
                  %240 = vst [vmem:[%s230 + $0x10] sm:$0xf] %v239
                  %v241 = vld [vmem:[%s229 + $0x28] sm:$0xf]
                  %242 = vst [vmem:[%s230 + $0x14] sm:$0xf] %v241
                  %v243 = vld [vmem:[%s229 + $0x30] sm:$0xf]
                  %244 = vst [vmem:[%s230 + $0x18] sm:$0xf] %v243
                  %v245 = vld [vmem:[%s229 + $0x38] sm:$0xf]
                  %246 = vst [vmem:[%s230 + $0x1c] sm:$0xf] %v245
                  %v247 = vld [vmem:[%s229 + $0x40] sm:$0xf]
                  %248 = vst [vmem:[%s230 + $0x20] sm:$0xf] %v247
                  %v249 = vld [vmem:[%s229 + $0x48] sm:$0xf]
                  %250 = vst [vmem:[%s230 + $0x24] sm:$0xf] %v249
                  %v251 = vld [vmem:[%s229 + $0x50] sm:$0xf]
                  %252 = vst [vmem:[%s230 + $0x28] sm:$0xf] %v251
                  %v253 = vld [vmem:[%s229 + $0x58] sm:$0xf]
                  %254 = vst [vmem:[%s230 + $0x2c] sm:$0xf] %v253
                  %v255 = vld [vmem:[%s229 + $0x60] sm:$0xf]
                  %256 = vst [vmem:[%s230 + $0x30] sm:$0xf] %v255
                  %v257 = vld [vmem:[%s229 + $0x68] sm:$0xf]
                  %258 = vst [vmem:[%s230 + $0x34] sm:$0xf] %v257
                  %v259 = vld [vmem:[%s229 + $0x70] sm:$0xf]
                  %260 = vst [vmem:[%s230 + $0x38] sm:$0xf] %v259
                  %v261 = vld [vmem:[%s229 + $0x78] sm:$0xf]
                  %262 = vst [vmem:[%s230 + $0x3c] sm:$0xf] %v261
                $region59: #{boxhead_forward.3} parent=46 // loop_footer
                  %s228 = sadd.s32 1, %s224
                $region60: #{boxhead_forward.3} parent=46 // loop_footer_branch
                  %223 = sbr.rel target = $region56
                $region61: #{boxhead_forward.3} parent=46 // loop_exit
                  _
              $region47: #{boxhead_forward.3} parent=31 // pred_fallthru
                _
            $region32: #{boxhead_forward.3} parent=27 // pred_fallthru
              _
            // Predicated region
            $region33: #{boxhead_forward.3} parent=27 // pred_check
              _
            $region34: #{boxhead_forward.3} parent=27 // pred_check_branch
              %170 = sbr.rel (0) target = $region36
            $region35: #{boxhead_forward.3} parent=27 // pred_region
              loop: start=0, step=1, limit=1
              $region37: #{boxhead_forward.3} parent=35 // loop_pre_header
                _
              $region38: #{boxhead_forward.3} parent=35 // loop_header
                %s173 = sphi 0, %s177
                %p174 = scmp.ge.s32.totalorder %s173, 1
                %s178 = sphi %s164, %s164
                %s179 = sphi %s159, %s159
              $region39: #{boxhead_forward.3} parent=35 // loop_header_branch
                %176 = sbr.rel (%p174) target = $region43
              $region40: #{boxhead_forward.3} parent=35 // loop_body
                %v180 = vld [vmem:[%s178] sm:$0xf]
                %181 = vst [vmem:[%s179] sm:$0xf] %v180
                %v182 = vld [vmem:[%s178 + $0x8] sm:$0xf]
                %183 = vst [vmem:[%s179 + $0x4] sm:$0xf] %v182
                %v184 = vld [vmem:[%s178 + $0x10] sm:$0xf]
                %185 = vst [vmem:[%s179 + $0x8] sm:$0xf] %v184
                %v186 = vld [vmem:[%s178 + $0x18] sm:$0xf]
                %187 = vst [vmem:[%s179 + $0xc] sm:$0xf] %v186
                %v188 = vld [vmem:[%s178 + $0x20] sm:$0xf]
                %189 = vst [vmem:[%s179 + $0x10] sm:$0xf] %v188
                %v190 = vld [vmem:[%s178 + $0x28] sm:$0xf]
                %191 = vst [vmem:[%s179 + $0x14] sm:$0xf] %v190
                %v192 = vld [vmem:[%s178 + $0x30] sm:$0xf]
                %193 = vst [vmem:[%s179 + $0x18] sm:$0xf] %v192
                %v194 = vld [vmem:[%s178 + $0x38] sm:$0xf]
                %195 = vst [vmem:[%s179 + $0x1c] sm:$0xf] %v194
                %v196 = vld [vmem:[%s178 + $0x40] sm:$0xf]
                %197 = vst [vmem:[%s179 + $0x20] sm:$0xf] %v196
                %v198 = vld [vmem:[%s178 + $0x48] sm:$0xf]
                %199 = vst [vmem:[%s179 + $0x24] sm:$0xf] %v198
                %v200 = vld [vmem:[%s178 + $0x50] sm:$0xf]
                %201 = vst [vmem:[%s179 + $0x28] sm:$0xf] %v200
                %v202 = vld [vmem:[%s178 + $0x58] sm:$0xf]
                %203 = vst [vmem:[%s179 + $0x2c] sm:$0xf] %v202
                %v204 = vld [vmem:[%s178 + $0x60] sm:$0xf]
                %205 = vst [vmem:[%s179 + $0x30] sm:$0xf] %v204
                %v206 = vld [vmem:[%s178 + $0x68] sm:$0xf]
                %207 = vst [vmem:[%s179 + $0x34] sm:$0xf] %v206
                %v208 = vld [vmem:[%s178 + $0x70] sm:$0xf]
                %209 = vst [vmem:[%s179 + $0x38] sm:$0xf] %v208
                %v210 = vld [vmem:[%s178 + $0x78] sm:$0xf]
                %211 = vst [vmem:[%s179 + $0x3c] sm:$0xf] %v210
              $region41: #{boxhead_forward.3} parent=35 // loop_footer
                %s177 = sadd.s32 1, %s173
              $region42: #{boxhead_forward.3} parent=35 // loop_footer_branch
                %172 = sbr.rel target = $region38
              $region43: #{boxhead_forward.3} parent=35 // loop_exit
                _
            $region36: #{boxhead_forward.3} parent=27 // pred_fallthru
              _
          $region28: #{boxhead_forward.3} parent=23 // pred_fallthru
            _
          %263 = vnop
        $region24: #{boxhead_forward.3} parent=15 // pred_fallthru
          _
        // Predicated region
        $region62: #{boxhead_forward.3} parent=15 // pred_check
          %p264 = pneg %p95
        $region63: #{boxhead_forward.3} parent=15 // pred_check_branch
          %266 = sbr.rel (%p264) target = $region65
        $region64: #{boxhead_forward.3} parent=15 // pred_region
          %p267 = scmp.lt.s32.totalorder %s16, 1
          %s268 = scalar_select %p267, %s16, 1
          %s269 = scalar_lea.vmem %s2, %s268
        $region65: #{boxhead_forward.3} parent=15 // pred_fallthru
          _
      $region16: #{boxhead_forward.3} parent=5 // pred_fallthru
        _
      %p270 = scmp.le.s32.totalorder 1, %s9
      %p271 = scmp.lt.s32.totalorder %s9, 5
      %p272 = pnand %p270, %p271
      %p273 = pneg %p272
      // Predicated region
      $region66: #{boxhead_forward.3} parent=5 // pred_check
        _
      $region67: #{boxhead_forward.3} parent=5 // pred_check_branch
        %275 = sbr.rel (%p272) target = $region69
      $region68: #{boxhead_forward.3} parent=5 // pred_region
        %s276 = ssub.s32 %s9, 1
        %s277 = sand.u32 %s62, 1
        %s278 = sand.u32 %s62, 1
        %s279 = smul.addr %s278, 64
        %s280 = scalar_lea.vmem [#allocation3], %s279
        // Predicated region
        $region70: #{boxhead_forward.3} parent=68 // pred_check
          %p281 = pneg %p75
        $region71: #{boxhead_forward.3} parent=68 // pred_check_branch
          %283 = sbr.rel (%p281) target = $region73
        $region72: #{boxhead_forward.3} parent=68 // pred_region
          _
        $region73: #{boxhead_forward.3} parent=68 // pred_fallthru
          _
        %p284 = scmp.lt.s32.totalorder %s19, 1
        %s285 = scalar_select %p284, %s19, 1
        %s286 = smul.addr %s285, 4
        %s287 = scalar_lea.vmem %s0, %s286
        %p288 = pneg %p47
        %p289 = pneg %p44
        %s290 = sand.u32 %s62, 1
        %s291 = sand.u32 %s62, 1
        %s292 = smul.addr %s291, 64
        %s293 = scalar_lea.vmem [#allocation3], %s292
        %p294 = pneg %p75
        %p295 = pneg %p72
        %p296 = scmp.lt.s32.totalorder %s18, 1
        %s297 = scalar_select %p296, %s18, 1
        %s298 = scalar_lea.vmem %s2, %s297
        %p299 = pneg %p101
        %p300 = pneg %p98
        %p301 = pneg %p127
        %p302 = pneg %p124
        %p303 = scmp.lt.s32.totalorder %s18, 1
        %s304 = scalar_select %p303, %s18, 1
        %s305 = smul.addr %s304, 8
        %s306 = scalar_lea.vmem %s3, %s305
        %p307 = scmp.lt.s32.totalorder %s19, 1
        %s308 = scalar_select %p307, %s19, 1
        %s309 = smul.addr %s308, 4
        %s310 = scalar_lea.vmem %s0, %s309
        %s311 = smul.u32 16, %s19
        %p312 = scmp.lt.s32.totalorder %s18, 1
        %s313 = scalar_select %p312, %s18, 1
        %s314 = scalar_lea.vmem %s2, %s313
        %p315 = scmp.lt.s32.totalorder %s18, 1
        %s316 = scalar_select %p315, %s18, 1
        %s317 = smul.addr %s316, 8
        %s318 = scalar_lea.vmem %s3, %s317
        %p320 = scmp.eq.s32.totalorder %s19, 0
        // Predicated region
        $region74: #{boxhead_forward.3} parent=68 // pred_check
          %p321 = pneg %p320
        $region75: #{boxhead_forward.3} parent=68 // pred_check_branch
          %323 = sbr.rel (%p321) target = $region77
        $region76: #{boxhead_forward.3} parent=68 // pred_region
          %324 = vst [vmem:[#allocation2] sm:$0xff] 0.0
        $region77: #{boxhead_forward.3} parent=68 // pred_fallthru
          _
        %v325 = vld [vmem:[#allocation2] sm:$0xff]
        %v326 = vld [vmem:[%s310] sm:$0xf]
        %v327 = vld [vmem:[%s280] sm:$0xf]
        %v328 = vld [vmem:[%s280 + $0x4] sm:$0xf]
        %v329 = vld [vmem:[%s280 + $0x8] sm:$0xf]
        %v330 = vld [vmem:[%s280 + $0xc] sm:$0xf]
        %v331 = vld [vmem:[%s280 + $0x10] sm:$0xf]
        %v332 = vld [vmem:[%s280 + $0x14] sm:$0xf]
        %v333 = vld [vmem:[%s280 + $0x18] sm:$0xf]
        %v334 = vld [vmem:[%s280 + $0x1c] sm:$0xf]
        %v335 = vld [vmem:[%s280 + $0x20] sm:$0xf]
        %v336 = vld [vmem:[%s280 + $0x24] sm:$0xf]
        %v337 = vld [vmem:[%s280 + $0x28] sm:$0xf]
        %v338 = vld [vmem:[%s280 + $0x2c] sm:$0xf]
        %v339 = vld [vmem:[%s280 + $0x30] sm:$0xf]
        %v340 = vld [vmem:[%s280 + $0x34] sm:$0xf]
        %v341 = vld [vmem:[%s280 + $0x38] sm:$0xf]
        %v342 = vld [vmem:[%s280 + $0x3c] sm:$0xf]
        %v359 = vunpack.c.l.b16 %v327
        %v360 = vunpack.c.l.b16 %v328
        %v361 = vunpack.c.l.b16 %v329
        %v362 = vunpack.c.l.b16 %v330
        %v363 = vunpack.c.l.b16 %v331
        %v364 = vunpack.c.l.b16 %v332
        %v365 = vunpack.c.l.b16 %v333
        %v366 = vunpack.c.l.b16 %v334
        %v367 = vunpack.c.l.b16 %v335
        %v368 = vunpack.c.l.b16 %v336
        %v369 = vunpack.c.l.b16 %v337
        %v370 = vunpack.c.l.b16 %v338
        %v371 = vunpack.c.l.b16 %v339
        %v372 = vunpack.c.l.b16 %v340
        %v373 = vunpack.c.l.b16 %v341
        %v374 = vunpack.c.l.b16 %v342
        %v375 = vpack.c.b16 %v360, %v359
        %v376 = vpack.c.b16 %v362, %v361
        %v377 = vpack.c.b16 %v364, %v363
        %v378 = vpack.c.b16 %v366, %v365
        %v379 = vpack.c.b16 %v368, %v367
        %v380 = vpack.c.b16 %v370, %v369
        %v381 = vpack.c.b16 %v372, %v371
        %v382 = vpack.c.b16 %v374, %v373
        %391 = vmatprep.subr.bf16.mxu0 0
        %392 = vmatpush1.bf16.msra.mxu0 %v375
        %393 = vmatprep.subr.bf16.mxu0 0
        %394 = vmatpush1.bf16.msra.mxu0 %v376
        %395 = vmatprep.subr.bf16.mxu0 0
        %396 = vmatpush1.bf16.msra.mxu0 %v377
        %397 = vmatprep.subr.bf16.mxu0 0
        %398 = vmatpush1.bf16.msra.mxu0 %v378
        %399 = vmatprep.subr.bf16.mxu0 0
        %400 = vmatpush1.bf16.msra.mxu0 %v379
        %401 = vmatprep.subr.bf16.mxu0 0
        %402 = vmatpush1.bf16.msra.mxu0 %v380
        %403 = vmatprep.subr.bf16.mxu0 0
        %404 = vmatpush1.bf16.msra.mxu0 %v381
        %405 = vmatprep.subr.bf16.mxu0 0
        %406 = vmatpush1.bf16.msra.mxu0 %v382
        %407 = vmatprep.subr.bf16.mxu0 0
        %408 = vmatpush1.bf16.msra.mxu0 0
        %409 = vmatprep.subr.bf16.mxu0 0
        %410 = vmatpush1.bf16.msra.mxu0 0
        %411 = vmatprep.subr.bf16.mxu0 0
        %412 = vmatpush1.bf16.msra.mxu0 0
        %413 = vmatprep.subr.bf16.mxu0 0
        %414 = vmatpush1.bf16.msra.mxu0 0
        %415 = vmatprep.subr.bf16.mxu0 0
        %416 = vmatpush1.bf16.msra.mxu0 0
        %417 = vmatprep.subr.bf16.mxu0 0
        %418 = vmatpush1.bf16.msra.mxu0 0
        %419 = vmatprep.subr.bf16.mxu0 0
        %420 = vmatpush1.bf16.msra.mxu0 0
        %421 = vmatprep.subr.bf16.mxu0 0
        %422 = vmatpush1.bf16.msra.mxu0 0
        %423 = vmatprep.mubr.bf16.mxu0 0
        %424 = vmatmul.mubr.bf16.gmra.mrb[0].mxu0 %v326
        %v425 = vpop.f32.mrb[0].mxu0
        %v426 = vadd.f32 0.0, %v425
        %v427 = vpop.f32.mrb[0].mxu0
        %v428 = vpop.f32.mrb[0].mxu0
        %v429 = vpop.f32.mrb[0].mxu0
        %430 = vdwg.mxu0
        %v431 = vadd.f32 %v325, %v426
        %432 = vst [vmem:[#allocation2] sm:$0xff] %v431
        %p433 = scmp.eq.s32.totalorder %s19, 1
        // Predicated region
        $region78: #{boxhead_forward.3} parent=68 // pred_check
          %p434 = pneg %p433
        $region79: #{boxhead_forward.3} parent=68 // pred_check_branch
          %436 = sbr.rel (%p434) target = $region81
        $region80: #{boxhead_forward.3} parent=68 // pred_region
          %v437 = vld [vmem:[#allocation2] sm:$0xff]
          %v438 = vld [vmem:[%s314] sm:$0x1]
          %v440 = vlaneseq
          %v441 = vshrl.u32 %v440, 7
          %v442 = vsub.s32 0, %v441
          %v443 = vrot.slane %v438, %v442
          %v445 = vadd.f32 %v437, %v443
          %v446 = vmax.f32 %v445, 0.0
          %447 = vst [vmem:[%s318] sm:$0xff] %v446
        $region81: #{boxhead_forward.3} parent=68 // pred_fallthru
          _
        %p448 = scmp.lt.s32.totalorder %s18, 1
        %s449 = scalar_select %p448, %s18, 1
        %s450 = smul.addr %s449, 8
        %s451 = scalar_lea.vmem %s3, %s450
        // Predicated region
        $region82: #{boxhead_forward.3} parent=68 // pred_check
          %p452 = pneg %p124
        $region83: #{boxhead_forward.3} parent=68 // pred_check_branch
          %454 = sbr.rel (%p452) target = $region85
        $region84: #{boxhead_forward.3} parent=68 // pred_region
          _
        $region85: #{boxhead_forward.3} parent=68 // pred_fallthru
          _
      $region69: #{boxhead_forward.3} parent=5 // pred_fallthru
        _
      %p455 = scmp.le.s32.totalorder 2, %s9
      // Predicated region
      $region86: #{boxhead_forward.3} parent=5 // pred_check
        %p456 = pneg %p455
      $region87: #{boxhead_forward.3} parent=5 // pred_check_branch
        %458 = sbr.rel (%p456) target = $region89
      $region88: #{boxhead_forward.3} parent=5 // pred_region
        %s459 = ssub.s32 %s9, 2
        // Predicated region
        $region90: #{boxhead_forward.3} parent=88 // pred_check
          %p460 = pneg %p130
        $region91: #{boxhead_forward.3} parent=88 // pred_check_branch
          %462 = sbr.rel (%p460) target = $region93
        $region92: #{boxhead_forward.3} parent=88 // pred_region
          %p463 = scmp.lt.s32.totalorder %s20, 1
          %s464 = scalar_select %p463, %s20, 1
          %s465 = smul.addr %s464, 8
          %s466 = scalar_lea.vmem %s3, %s465
        $region93: #{boxhead_forward.3} parent=88 // pred_fallthru
          _
      $region89: #{boxhead_forward.3} parent=5 // pred_fallthru
        _
    $region6: #{boxhead_forward.3} parent=1 // loop_footer
      %s13 = sadd.s32 1, %s9
    $region7: #{boxhead_forward.3} parent=1 // loop_footer_branch
      %8 = sbr.rel target = $region3
    $region8: #{boxhead_forward.3} parent=1 // loop_exit
      _

// kernel: boxhead_forward.2
$region0: #{boxhead_forward.2}
  #allocation0 [shape = 'u32[]', space=smem, size = 0x4, offset = 0x4, fixed_abs, tag = 'smem constant byte address 0x4 - core index']
  #allocation1 [shape = 'u32[144,128]{1,0:T(1,128)}', space=vmem, size = 0x12000, scoped, tag = 'internal scratch']
  #allocation2 [shape = 'f32[8,128]{1,0:T(8,128)}', space=vmem, size = 0x1000, scoped, tag = 'scratch operand']
  %s0 = inlined_call_operand.vmem [shape: bf16[8,512], index: 0, kind: input, shape index: {}]
  %s1 = inlined_call_operand.vmem [shape: bf16[512,256], index: 1, kind: input, shape index: {}]
  %s2 = inlined_call_operand.vmem [shape: f32[1,256], index: 2, kind: input, shape index: {}]
  %s3 = inlined_call_operand.vmem [shape: f32[8,256], index: 3, kind: output, shape index: {}]
  %s4 = sld [smem:[#allocation0]]
  $region94: #{boxhead_forward.2} parent=0
    _
  %s6 = ssub.s32 1, %s4
  %s7 = scalar_select 0, %s6, %s4
  $region1: #{boxhead_forward.2} parent=0
    #allocation3 [shape = 'u8[65536]{0}', space=vmem, size = 0x10000, scoped, tag = 'input window, operand 1']
    loop: start=0, step=1, limit=10
    $region2: #{boxhead_forward.2} parent=1 // loop_pre_header
      _
    $region3: #{boxhead_forward.2} parent=1 // loop_header
      %s9 = sphi 0, %s13
      %p10 = scmp.ge.s32.totalorder %s9, 10
      %s16 = sphi 0, %s28
      %s17 = sphi 0, %s24
      %s18 = sphi 0, %s16
      %s19 = sphi 0, %s17
      %s20 = sphi 0, %s18
      %s21 = sphi 0, %s19
      %s31 = sphi 0, %s33
      %s34 = sphi 0, %s31
      %s35 = sphi 0, %s34
      %s51 = sphi 0, %s35
      %s59 = sphi 0, %s61
      %s62 = sphi 0, %s59
      %s63 = sphi 0, %s62
      %s79 = sphi 0, %s63
      %s85 = sphi 0, %s87
      %s88 = sphi 0, %s85
      %s89 = sphi 0, %s88
      %s105 = sphi 0, %s89
      %s111 = sphi 0, %s113
      %s114 = sphi 0, %s111
      %s115 = sphi 0, %s114
      %s131 = sphi 0, %s115
    $region4: #{boxhead_forward.2} parent=1 // loop_header_branch
      %12 = sbr.rel (%p10) target = $region8
    $region5: #{boxhead_forward.2} parent=1 // loop_body
      %s14 = ssub.s32 %s9, 1
      %s15 = ssub.s32 %s9, 2
      %s22 = sadd.s32 1, %s17
      %p23 = scmp.ge.s32.totalorder %s22, 4
      %s24 = scalar_select %p23, 0, %s22
      %s25 = sadd.s32 1, %s16
      %s26 = scalar_select %p23, %s25, %s16
      %p27 = scmp.ge.s32.totalorder %s26, 2
      %s28 = scalar_select %p27, 0, %s26
      %s29 = ssub.s32 %s17, %s24
      %p30 = scmp.eq.s32.totalorder %s29, 0
      %s32 = sadd.s32 %s31, 1
      %s33 = scalar_select %p30, %s31, %s32
      %p36 = pneg %p30
      %p37 = scmp.eq.s32.totalorder %s9, 7
      %p38 = por %p36, %p37
      %p39 = scmp.ne.s32.totalorder %s31, %s34
      %p40 = scmp.eq.s32.totalorder %s9, 0
      %p41 = por %p39, %p40
      %p42 = scmp.ne.s32.totalorder %s31, %s34
      %p43 = scmp.eq.s32.totalorder %s14, 7
      %p44 = por %p42, %p43
      %p45 = scmp.ne.s32.totalorder %s34, %s35
      %p46 = scmp.eq.s32.totalorder %s14, 0
      %p47 = por %p45, %p46
      %p48 = scmp.ne.s32.totalorder %s34, %s35
      %p49 = scmp.eq.s32.totalorder %s15, 7
      %p50 = por %p48, %p49
      %p52 = scmp.ne.s32.totalorder %s35, %s51
      %p53 = scmp.eq.s32.totalorder %s15, 0
      %p54 = por %p52, %p53
      %s55 = ssub.s32 %s17, %s24
      %s56 = ssub.s32 %s16, %s28
      %s57 = sor.u32 %s55, %s56
      %p58 = scmp.eq.s32.totalorder %s57, 0
      %s60 = sadd.s32 %s59, 1
      %s61 = scalar_select %p58, %s59, %s60
      %p64 = pneg %p58
      %p65 = scmp.eq.s32.totalorder %s9, 7
      %p66 = por %p64, %p65
      %p67 = scmp.ne.s32.totalorder %s59, %s62
      %p68 = scmp.eq.s32.totalorder %s9, 0
      %p69 = por %p67, %p68
      %p70 = scmp.ne.s32.totalorder %s59, %s62
      %p71 = scmp.eq.s32.totalorder %s14, 7
      %p72 = por %p70, %p71
      %p73 = scmp.ne.s32.totalorder %s62, %s63
      %p74 = scmp.eq.s32.totalorder %s14, 0
      %p75 = por %p73, %p74
      %p76 = scmp.ne.s32.totalorder %s62, %s63
      %p77 = scmp.eq.s32.totalorder %s15, 7
      %p78 = por %p76, %p77
      %p80 = scmp.ne.s32.totalorder %s63, %s79
      %p81 = scmp.eq.s32.totalorder %s15, 0
      %p82 = por %p80, %p81
      %s83 = ssub.s32 %s16, %s28
      %p84 = scmp.eq.s32.totalorder %s83, 0
      %s86 = sadd.s32 %s85, 1
      %s87 = scalar_select %p84, %s85, %s86
      %p90 = pneg %p84
      %p91 = scmp.eq.s32.totalorder %s9, 7
      %p92 = por %p90, %p91
      %p93 = scmp.ne.s32.totalorder %s85, %s88
      %p94 = scmp.eq.s32.totalorder %s9, 0
      %p95 = por %p93, %p94
      %p96 = scmp.ne.s32.totalorder %s85, %s88
      %p97 = scmp.eq.s32.totalorder %s14, 7
      %p98 = por %p96, %p97
      %p99 = scmp.ne.s32.totalorder %s88, %s89
      %p100 = scmp.eq.s32.totalorder %s14, 0
      %p101 = por %p99, %p100
      %p102 = scmp.ne.s32.totalorder %s88, %s89
      %p103 = scmp.eq.s32.totalorder %s15, 7
      %p104 = por %p102, %p103
      %p106 = scmp.ne.s32.totalorder %s89, %s105
      %p107 = scmp.eq.s32.totalorder %s15, 0
      %p108 = por %p106, %p107
      %s109 = ssub.s32 %s16, %s28
      %p110 = scmp.eq.s32.totalorder %s109, 0
      %s112 = sadd.s32 %s111, 1
      %s113 = scalar_select %p110, %s111, %s112
      %p116 = pneg %p110
      %p117 = scmp.eq.s32.totalorder %s9, 7
      %p118 = por %p116, %p117
      %p119 = scmp.ne.s32.totalorder %s111, %s114
      %p120 = scmp.eq.s32.totalorder %s9, 0
      %p121 = por %p119, %p120
      %p122 = scmp.ne.s32.totalorder %s111, %s114
      %p123 = scmp.eq.s32.totalorder %s14, 7
      %p124 = por %p122, %p123
      %p125 = scmp.ne.s32.totalorder %s114, %s115
      %p126 = scmp.eq.s32.totalorder %s14, 0
      %p127 = por %p125, %p126
      %p128 = scmp.ne.s32.totalorder %s114, %s115
      %p129 = scmp.eq.s32.totalorder %s15, 7
      %p130 = por %p128, %p129
      %p132 = scmp.ne.s32.totalorder %s115, %s131
      %p133 = scmp.eq.s32.totalorder %s15, 0
      %p134 = por %p132, %p133
      %p135 = scmp.le.s32.totalorder 1, %s9
      %p136 = scmp.lt.s32.totalorder %s9, 9
      %p137 = pnand %p135, %p136
      %p138 = pneg %p137
      // Predicated region
      $region9: #{boxhead_forward.2} parent=5 // pred_check
        _
      $region10: #{boxhead_forward.2} parent=5 // pred_check_branch
        %140 = sbr.rel (%p137) target = $region12
      $region11: #{boxhead_forward.2} parent=5 // pred_region
        %s141 = ssub.s32 %s9, 1
      $region12: #{boxhead_forward.2} parent=5 // pred_fallthru
        _
      %p142 = scmp.lt.s32.totalorder %s9, 8
      // Predicated region
      $region13: #{boxhead_forward.2} parent=5 // pred_check
        %p143 = pneg %p142
      $region14: #{boxhead_forward.2} parent=5 // pred_check_branch
        %145 = sbr.rel (%p143) target = $region16
      $region15: #{boxhead_forward.2} parent=5 // pred_region
        // Predicated region
        $region17: #{boxhead_forward.2} parent=15 // pred_check
          %p146 = pneg %p41
        $region18: #{boxhead_forward.2} parent=15 // pred_check_branch
          %148 = sbr.rel (%p146) target = $region20
        $region19: #{boxhead_forward.2} parent=15 // pred_region
          %p149 = scmp.lt.s32.totalorder %s17, 3
          %s150 = scalar_select %p149, %s17, 3
          %s151 = smul.addr %s150, 4
          %s152 = scalar_lea.vmem %s0, %s151
        $region20: #{boxhead_forward.2} parent=15 // pred_fallthru
          _
        // Predicated region
        $region21: #{boxhead_forward.2} parent=15 // pred_check
          %p153 = pneg %p69
        $region22: #{boxhead_forward.2} parent=15 // pred_check_branch
          %155 = sbr.rel (%p153) target = $region24
        $region23: #{boxhead_forward.2} parent=15 // pred_region
          %s156 = sand.u32 %s59, 1
          %s157 = sand.u32 %s59, 1
          %s158 = smul.addr %s157, 64
          %s159 = scalar_lea.vmem [#allocation3], %s158
          %s160 = smul.u32 16, %s17
          %s161 = smul.addr %s160, 2
          %s162 = sadd.s32 %s16, %s161
          %s163 = smul.addr %s162, 4
          %s164 = scalar_lea.vmem %s1, %s163
          // Predicated region
          $region25: #{boxhead_forward.2} parent=23 // pred_check
            _
          $region26: #{boxhead_forward.2} parent=23 // pred_check_branch
            %166 = sbr.rel (0) target = $region28
          $region27: #{boxhead_forward.2} parent=23 // pred_region
            // Predicated region
            $region29: #{boxhead_forward.2} parent=27 // pred_check
              _
            $region30: #{boxhead_forward.2} parent=27 // pred_check_branch
              %168 = sbr.rel target = $region32
            $region31: #{boxhead_forward.2} parent=27 // pred_region
              // Predicated region
              $region44: #{boxhead_forward.2} parent=31 // pred_check
                _
              $region45: #{boxhead_forward.2} parent=31 // pred_check_branch
                %213 = sbr.rel (0) target = $region47
              $region46: #{boxhead_forward.2} parent=31 // pred_region
                loop: start=0, step=1, limit=1
                $region48: #{boxhead_forward.2} parent=46 // loop_pre_header
                  _
                $region49: #{boxhead_forward.2} parent=46 // loop_header
                  %s215 = sphi 0, %s219
                  %p216 = scmp.ge.s32.totalorder %s215, 1
                  %s220 = sphi %s164, %s164
                  %s221 = sphi %s159, %s159
                $region50: #{boxhead_forward.2} parent=46 // loop_header_branch
                  %218 = sbr.rel (%p216) target = $region54
                $region51: #{boxhead_forward.2} parent=46 // loop_body
                  _
                $region52: #{boxhead_forward.2} parent=46 // loop_footer
                  %s219 = sadd.s32 1, %s215
                $region53: #{boxhead_forward.2} parent=46 // loop_footer_branch
                  %214 = sbr.rel target = $region49
                $region54: #{boxhead_forward.2} parent=46 // loop_exit
                  _
                loop: start=0, step=1, limit=1
                $region55: #{boxhead_forward.2} parent=46 // loop_pre_header
                  _
                $region56: #{boxhead_forward.2} parent=46 // loop_header
                  %s224 = sphi 0, %s228
                  %p225 = scmp.ge.s32.totalorder %s224, 1
                  %s229 = sphi %s164, %s164
                  %s230 = sphi %s159, %s159
                $region57: #{boxhead_forward.2} parent=46 // loop_header_branch
                  %227 = sbr.rel (%p225) target = $region61
                $region58: #{boxhead_forward.2} parent=46 // loop_body
                  %v231 = vld [vmem:[%s229] sm:$0xf]
                  %232 = vst [vmem:[%s230] sm:$0xf] %v231
                  %v233 = vld [vmem:[%s229 + $0x8] sm:$0xf]
                  %234 = vst [vmem:[%s230 + $0x4] sm:$0xf] %v233
                  %v235 = vld [vmem:[%s229 + $0x10] sm:$0xf]
                  %236 = vst [vmem:[%s230 + $0x8] sm:$0xf] %v235
                  %v237 = vld [vmem:[%s229 + $0x18] sm:$0xf]
                  %238 = vst [vmem:[%s230 + $0xc] sm:$0xf] %v237
                  %v239 = vld [vmem:[%s229 + $0x20] sm:$0xf]
                  %240 = vst [vmem:[%s230 + $0x10] sm:$0xf] %v239
                  %v241 = vld [vmem:[%s229 + $0x28] sm:$0xf]
                  %242 = vst [vmem:[%s230 + $0x14] sm:$0xf] %v241
                  %v243 = vld [vmem:[%s229 + $0x30] sm:$0xf]
                  %244 = vst [vmem:[%s230 + $0x18] sm:$0xf] %v243
                  %v245 = vld [vmem:[%s229 + $0x38] sm:$0xf]
                  %246 = vst [vmem:[%s230 + $0x1c] sm:$0xf] %v245
                  %v247 = vld [vmem:[%s229 + $0x40] sm:$0xf]
                  %248 = vst [vmem:[%s230 + $0x20] sm:$0xf] %v247
                  %v249 = vld [vmem:[%s229 + $0x48] sm:$0xf]
                  %250 = vst [vmem:[%s230 + $0x24] sm:$0xf] %v249
                  %v251 = vld [vmem:[%s229 + $0x50] sm:$0xf]
                  %252 = vst [vmem:[%s230 + $0x28] sm:$0xf] %v251
                  %v253 = vld [vmem:[%s229 + $0x58] sm:$0xf]
                  %254 = vst [vmem:[%s230 + $0x2c] sm:$0xf] %v253
                  %v255 = vld [vmem:[%s229 + $0x60] sm:$0xf]
                  %256 = vst [vmem:[%s230 + $0x30] sm:$0xf] %v255
                  %v257 = vld [vmem:[%s229 + $0x68] sm:$0xf]
                  %258 = vst [vmem:[%s230 + $0x34] sm:$0xf] %v257
                  %v259 = vld [vmem:[%s229 + $0x70] sm:$0xf]
                  %260 = vst [vmem:[%s230 + $0x38] sm:$0xf] %v259
                  %v261 = vld [vmem:[%s229 + $0x78] sm:$0xf]
                  %262 = vst [vmem:[%s230 + $0x3c] sm:$0xf] %v261
                $region59: #{boxhead_forward.2} parent=46 // loop_footer
                  %s228 = sadd.s32 1, %s224
                $region60: #{boxhead_forward.2} parent=46 // loop_footer_branch
                  %223 = sbr.rel target = $region56
                $region61: #{boxhead_forward.2} parent=46 // loop_exit
                  _
              $region47: #{boxhead_forward.2} parent=31 // pred_fallthru
                _
            $region32: #{boxhead_forward.2} parent=27 // pred_fallthru
              _
            // Predicated region
            $region33: #{boxhead_forward.2} parent=27 // pred_check
              _
            $region34: #{boxhead_forward.2} parent=27 // pred_check_branch
              %170 = sbr.rel (0) target = $region36
            $region35: #{boxhead_forward.2} parent=27 // pred_region
              loop: start=0, step=1, limit=1
              $region37: #{boxhead_forward.2} parent=35 // loop_pre_header
                _
              $region38: #{boxhead_forward.2} parent=35 // loop_header
                %s173 = sphi 0, %s177
                %p174 = scmp.ge.s32.totalorder %s173, 1
                %s178 = sphi %s164, %s164
                %s179 = sphi %s159, %s159
              $region39: #{boxhead_forward.2} parent=35 // loop_header_branch
                %176 = sbr.rel (%p174) target = $region43
              $region40: #{boxhead_forward.2} parent=35 // loop_body
                %v180 = vld [vmem:[%s178] sm:$0xf]
                %181 = vst [vmem:[%s179] sm:$0xf] %v180
                %v182 = vld [vmem:[%s178 + $0x8] sm:$0xf]
                %183 = vst [vmem:[%s179 + $0x4] sm:$0xf] %v182
                %v184 = vld [vmem:[%s178 + $0x10] sm:$0xf]
                %185 = vst [vmem:[%s179 + $0x8] sm:$0xf] %v184
                %v186 = vld [vmem:[%s178 + $0x18] sm:$0xf]
                %187 = vst [vmem:[%s179 + $0xc] sm:$0xf] %v186
                %v188 = vld [vmem:[%s178 + $0x20] sm:$0xf]
                %189 = vst [vmem:[%s179 + $0x10] sm:$0xf] %v188
                %v190 = vld [vmem:[%s178 + $0x28] sm:$0xf]
                %191 = vst [vmem:[%s179 + $0x14] sm:$0xf] %v190
                %v192 = vld [vmem:[%s178 + $0x30] sm:$0xf]
                %193 = vst [vmem:[%s179 + $0x18] sm:$0xf] %v192
                %v194 = vld [vmem:[%s178 + $0x38] sm:$0xf]
                %195 = vst [vmem:[%s179 + $0x1c] sm:$0xf] %v194
                %v196 = vld [vmem:[%s178 + $0x40] sm:$0xf]
                %197 = vst [vmem:[%s179 + $0x20] sm:$0xf] %v196
                %v198 = vld [vmem:[%s178 + $0x48] sm:$0xf]
                %199 = vst [vmem:[%s179 + $0x24] sm:$0xf] %v198
                %v200 = vld [vmem:[%s178 + $0x50] sm:$0xf]
                %201 = vst [vmem:[%s179 + $0x28] sm:$0xf] %v200
                %v202 = vld [vmem:[%s178 + $0x58] sm:$0xf]
                %203 = vst [vmem:[%s179 + $0x2c] sm:$0xf] %v202
                %v204 = vld [vmem:[%s178 + $0x60] sm:$0xf]
                %205 = vst [vmem:[%s179 + $0x30] sm:$0xf] %v204
                %v206 = vld [vmem:[%s178 + $0x68] sm:$0xf]
                %207 = vst [vmem:[%s179 + $0x34] sm:$0xf] %v206
                %v208 = vld [vmem:[%s178 + $0x70] sm:$0xf]
                %209 = vst [vmem:[%s179 + $0x38] sm:$0xf] %v208
                %v210 = vld [vmem:[%s178 + $0x78] sm:$0xf]
                %211 = vst [vmem:[%s179 + $0x3c] sm:$0xf] %v210
              $region41: #{boxhead_forward.2} parent=35 // loop_footer
                %s177 = sadd.s32 1, %s173
              $region42: #{boxhead_forward.2} parent=35 // loop_footer_branch
                %172 = sbr.rel target = $region38
              $region43: #{boxhead_forward.2} parent=35 // loop_exit
                _
            $region36: #{boxhead_forward.2} parent=27 // pred_fallthru
              _
          $region28: #{boxhead_forward.2} parent=23 // pred_fallthru
            _
          %263 = vnop
        $region24: #{boxhead_forward.2} parent=15 // pred_fallthru
          _
        // Predicated region
        $region62: #{boxhead_forward.2} parent=15 // pred_check
          %p264 = pneg %p95
        $region63: #{boxhead_forward.2} parent=15 // pred_check_branch
          %266 = sbr.rel (%p264) target = $region65
        $region64: #{boxhead_forward.2} parent=15 // pred_region
          %p267 = scmp.lt.s32.totalorder %s16, 1
          %s268 = scalar_select %p267, %s16, 1
          %s269 = scalar_lea.vmem %s2, %s268
        $region65: #{boxhead_forward.2} parent=15 // pred_fallthru
          _
      $region16: #{boxhead_forward.2} parent=5 // pred_fallthru
        _
      %p270 = scmp.le.s32.totalorder 1, %s9
      %p271 = scmp.lt.s32.totalorder %s9, 9
      %p272 = pnand %p270, %p271
      %p273 = pneg %p272
      // Predicated region
      $region66: #{boxhead_forward.2} parent=5 // pred_check
        _
      $region67: #{boxhead_forward.2} parent=5 // pred_check_branch
        %275 = sbr.rel (%p272) target = $region69
      $region68: #{boxhead_forward.2} parent=5 // pred_region
        %s276 = ssub.s32 %s9, 1
        %s277 = sand.u32 %s62, 1
        %s278 = sand.u32 %s62, 1
        %s279 = smul.addr %s278, 64
        %s280 = scalar_lea.vmem [#allocation3], %s279
        // Predicated region
        $region70: #{boxhead_forward.2} parent=68 // pred_check
          %p281 = pneg %p75
        $region71: #{boxhead_forward.2} parent=68 // pred_check_branch
          %283 = sbr.rel (%p281) target = $region73
        $region72: #{boxhead_forward.2} parent=68 // pred_region
          _
        $region73: #{boxhead_forward.2} parent=68 // pred_fallthru
          _
        %p284 = scmp.lt.s32.totalorder %s19, 3
        %s285 = scalar_select %p284, %s19, 3
        %s286 = smul.addr %s285, 4
        %s287 = scalar_lea.vmem %s0, %s286
        %p288 = pneg %p47
        %p289 = pneg %p44
        %s290 = sand.u32 %s62, 1
        %s291 = sand.u32 %s62, 1
        %s292 = smul.addr %s291, 64
        %s293 = scalar_lea.vmem [#allocation3], %s292
        %p294 = pneg %p75
        %p295 = pneg %p72
        %p296 = scmp.lt.s32.totalorder %s18, 1
        %s297 = scalar_select %p296, %s18, 1
        %s298 = scalar_lea.vmem %s2, %s297
        %p299 = pneg %p101
        %p300 = pneg %p98
        %p301 = pneg %p127
        %p302 = pneg %p124
        %p303 = scmp.lt.s32.totalorder %s18, 1
        %s304 = scalar_select %p303, %s18, 1
        %s305 = smul.addr %s304, 8
        %s306 = scalar_lea.vmem %s3, %s305
        %p307 = scmp.lt.s32.totalorder %s19, 3
        %s308 = scalar_select %p307, %s19, 3
        %s309 = smul.addr %s308, 4
        %s310 = scalar_lea.vmem %s0, %s309
        %s311 = smul.u32 16, %s19
        %p312 = scmp.lt.s32.totalorder %s18, 1
        %s313 = scalar_select %p312, %s18, 1
        %s314 = scalar_lea.vmem %s2, %s313
        %p315 = scmp.lt.s32.totalorder %s18, 1
        %s316 = scalar_select %p315, %s18, 1
        %s317 = smul.addr %s316, 8
        %s318 = scalar_lea.vmem %s3, %s317
        %p320 = scmp.eq.s32.totalorder %s19, 0
        // Predicated region
        $region74: #{boxhead_forward.2} parent=68 // pred_check
          %p321 = pneg %p320
        $region75: #{boxhead_forward.2} parent=68 // pred_check_branch
          %323 = sbr.rel (%p321) target = $region77
        $region76: #{boxhead_forward.2} parent=68 // pred_region
          %324 = vst [vmem:[#allocation2] sm:$0xff] 0.0
        $region77: #{boxhead_forward.2} parent=68 // pred_fallthru
          _
        %v325 = vld [vmem:[#allocation2] sm:$0xff]
        %v326 = vld [vmem:[%s310] sm:$0xf]
        %v327 = vld [vmem:[%s280] sm:$0xf]
        %v328 = vld [vmem:[%s280 + $0x4] sm:$0xf]
        %v329 = vld [vmem:[%s280 + $0x8] sm:$0xf]
        %v330 = vld [vmem:[%s280 + $0xc] sm:$0xf]
        %v331 = vld [vmem:[%s280 + $0x10] sm:$0xf]
        %v332 = vld [vmem:[%s280 + $0x14] sm:$0xf]
        %v333 = vld [vmem:[%s280 + $0x18] sm:$0xf]
        %v334 = vld [vmem:[%s280 + $0x1c] sm:$0xf]
        %v335 = vld [vmem:[%s280 + $0x20] sm:$0xf]
        %v336 = vld [vmem:[%s280 + $0x24] sm:$0xf]
        %v337 = vld [vmem:[%s280 + $0x28] sm:$0xf]
        %v338 = vld [vmem:[%s280 + $0x2c] sm:$0xf]
        %v339 = vld [vmem:[%s280 + $0x30] sm:$0xf]
        %v340 = vld [vmem:[%s280 + $0x34] sm:$0xf]
        %v341 = vld [vmem:[%s280 + $0x38] sm:$0xf]
        %v342 = vld [vmem:[%s280 + $0x3c] sm:$0xf]
        %v359 = vunpack.c.l.b16 %v327
        %v360 = vunpack.c.l.b16 %v328
        %v361 = vunpack.c.l.b16 %v329
        %v362 = vunpack.c.l.b16 %v330
        %v363 = vunpack.c.l.b16 %v331
        %v364 = vunpack.c.l.b16 %v332
        %v365 = vunpack.c.l.b16 %v333
        %v366 = vunpack.c.l.b16 %v334
        %v367 = vunpack.c.l.b16 %v335
        %v368 = vunpack.c.l.b16 %v336
        %v369 = vunpack.c.l.b16 %v337
        %v370 = vunpack.c.l.b16 %v338
        %v371 = vunpack.c.l.b16 %v339
        %v372 = vunpack.c.l.b16 %v340
        %v373 = vunpack.c.l.b16 %v341
        %v374 = vunpack.c.l.b16 %v342
        %v375 = vpack.c.b16 %v360, %v359
        %v376 = vpack.c.b16 %v362, %v361
        %v377 = vpack.c.b16 %v364, %v363
        %v378 = vpack.c.b16 %v366, %v365
        %v379 = vpack.c.b16 %v368, %v367
        %v380 = vpack.c.b16 %v370, %v369
        %v381 = vpack.c.b16 %v372, %v371
        %v382 = vpack.c.b16 %v374, %v373
        %391 = vmatprep.subr.bf16.mxu0 0
        %392 = vmatpush1.bf16.msra.mxu0 %v375
        %393 = vmatprep.subr.bf16.mxu0 0
        %394 = vmatpush1.bf16.msra.mxu0 %v376
        %395 = vmatprep.subr.bf16.mxu0 0
        %396 = vmatpush1.bf16.msra.mxu0 %v377
        %397 = vmatprep.subr.bf16.mxu0 0
        %398 = vmatpush1.bf16.msra.mxu0 %v378
        %399 = vmatprep.subr.bf16.mxu0 0
        %400 = vmatpush1.bf16.msra.mxu0 %v379
        %401 = vmatprep.subr.bf16.mxu0 0
        %402 = vmatpush1.bf16.msra.mxu0 %v380
        %403 = vmatprep.subr.bf16.mxu0 0
        %404 = vmatpush1.bf16.msra.mxu0 %v381
        %405 = vmatprep.subr.bf16.mxu0 0
        %406 = vmatpush1.bf16.msra.mxu0 %v382
        %407 = vmatprep.subr.bf16.mxu0 0
        %408 = vmatpush1.bf16.msra.mxu0 0
        %409 = vmatprep.subr.bf16.mxu0 0
        %410 = vmatpush1.bf16.msra.mxu0 0
        %411 = vmatprep.subr.bf16.mxu0 0
        %412 = vmatpush1.bf16.msra.mxu0 0
        %413 = vmatprep.subr.bf16.mxu0 0
        %414 = vmatpush1.bf16.msra.mxu0 0
        %415 = vmatprep.subr.bf16.mxu0 0
        %416 = vmatpush1.bf16.msra.mxu0 0
        %417 = vmatprep.subr.bf16.mxu0 0
        %418 = vmatpush1.bf16.msra.mxu0 0
        %419 = vmatprep.subr.bf16.mxu0 0
        %420 = vmatpush1.bf16.msra.mxu0 0
        %421 = vmatprep.subr.bf16.mxu0 0
        %422 = vmatpush1.bf16.msra.mxu0 0
        %423 = vmatprep.mubr.bf16.mxu0 0
        %424 = vmatmul.mubr.bf16.gmra.mrb[0].mxu0 %v326
        %v425 = vpop.f32.mrb[0].mxu0
        %v426 = vadd.f32 0.0, %v425
        %v427 = vpop.f32.mrb[0].mxu0
        %v428 = vpop.f32.mrb[0].mxu0
        %v429 = vpop.f32.mrb[0].mxu0
        %430 = vdwg.mxu0
        %v431 = vadd.f32 %v325, %v426
        %432 = vst [vmem:[#allocation2] sm:$0xff] %v431
        %p433 = scmp.eq.s32.totalorder %s19, 3
        // Predicated region
        $region78: #{boxhead_forward.2} parent=68 // pred_check
          %p434 = pneg %p433
        $region79: #{boxhead_forward.2} parent=68 // pred_check_branch
          %436 = sbr.rel (%p434) target = $region81
        $region80: #{boxhead_forward.2} parent=68 // pred_region
          %v437 = vld [vmem:[#allocation2] sm:$0xff]
          %v438 = vld [vmem:[%s314] sm:$0x1]
          %v440 = vlaneseq
          %v441 = vshrl.u32 %v440, 7
          %v442 = vsub.s32 0, %v441
          %v443 = vrot.slane %v438, %v442
          %v445 = vadd.f32 %v437, %v443
          %v446 = vmax.f32 %v445, 0.0
          %447 = vst [vmem:[%s318] sm:$0xff] %v446
        $region81: #{boxhead_forward.2} parent=68 // pred_fallthru
          _
        %p448 = scmp.lt.s32.totalorder %s18, 1
        %s449 = scalar_select %p448, %s18, 1
        %s450 = smul.addr %s449, 8
        %s451 = scalar_lea.vmem %s3, %s450
        // Predicated region
        $region82: #{boxhead_forward.2} parent=68 // pred_check
          %p452 = pneg %p124
        $region83: #{boxhead_forward.2} parent=68 // pred_check_branch
          %454 = sbr.rel (%p452) target = $region85
        $region84: #{boxhead_forward.2} parent=68 // pred_region
          _
        $region85: #{boxhead_forward.2} parent=68 // pred_fallthru
          _
      $region69: #{boxhead_forward.2} parent=5 // pred_fallthru
        _
      %p455 = scmp.le.s32.totalorder 2, %s9
      // Predicated region
      $region86: #{boxhead_forward.2} parent=5 // pred_check
        %p456 = pneg %p455
      $region87: #{boxhead_forward.2} parent=5 // pred_check_branch
        %458 = sbr.rel (%p456) target = $region89
      $region88: #{boxhead_forward.2} parent=5 // pred_region
        %s459 = ssub.s32 %s9, 2
        // Predicated region
        $region90: #{boxhead_forward.2} parent=88 // pred_check
          %p460 = pneg %p130
        $region91: #{boxhead_forward.2} parent=88 // pred_check_branch
          %462 = sbr.rel (%p460) target = $region93
        $region92: #{boxhead_forward.2} parent=88 // pred_region
          %p463 = scmp.lt.s32.totalorder %s20, 1
          %s464 = scalar_select %p463, %s20, 1
          %s465 = smul.addr %s464, 8
          %s466 = scalar_lea.vmem %s3, %s465
        $region93: #{boxhead_forward.2} parent=88 // pred_fallthru
          _
      $region89: #{boxhead_forward.2} parent=5 // pred_fallthru
        _
    $region6: #{boxhead_forward.2} parent=1 // loop_footer
      %s13 = sadd.s32 1, %s9
    $region7: #{boxhead_forward.2} parent=1 // loop_footer_branch
      %8 = sbr.rel target = $region3
    $region8: #{boxhead_forward.2} parent=1 // loop_exit
      _

</llo_original>
